<compile_context>
chip_gen: v5e
topology: v5e:2x2
jax: 0.10.0
libtpu: 0.0.40
codegen_flags: <defaults>
</compile_context>

<pallas_src>
import jax
import jax.numpy as jnp
from jax.experimental import pallas as pl
from jax.experimental.pallas import tpu as pltpu


def bayesian_linear_kernel(x_ref, wp_ref, bp_ref, o_ref):
    # Packed parameter rows: 0 = mu, 1 = rho, 2 = eps (reparameterization noise).
    # Stable softplus: softplus(rho) = logaddexp(rho, 0).
    w = wp_ref[0:1, :] + jnp.logaddexp(wp_ref[1:2, :], 0.0) * wp_ref[2:3, :]  # (1, D)
    b = bp_ref[0:1, :] + jnp.logaddexp(bp_ref[1:2, :], 0.0) * bp_ref[2:3, :]  # (1, 1)

    # y = W @ x_tile.T : contract the shared last (feature) dim of both
    # operands -> (1, TB). Output last dim = batch tile, so stores are
    # lane-dense and the MXU N dimension is actually filled.
    y = jax.lax.dot_general(
        w, x_ref[...],
        dimension_numbers=(((1,), (1,)), ((), ())),
        preferred_element_type=jnp.float32,
    )
    o_ref[...] = y + b  # (1, 1) bias broadcasts over the batch lanes


def bayesian_regressor_forward(x, w_mu, w_rho, eps_w, b_mu, b_rho, eps_b,
                               *, block_b=512):
    """Forward pass of BayesianRegressor: one sampled BayesianLinear(D, 1)."""
    B, D = x.shape

    # Coalesce the six tiny parameter tensors into two packed VMEM inputs.
    w_pack = jnp.concatenate([w_mu, w_rho, eps_w], axis=0).astype(jnp.float32)   # (3, D)
    b_pack = jnp.concatenate(
        [b_mu.reshape(1, 1), b_rho.reshape(1, 1), eps_b.reshape(1, 1)], axis=0
    ).astype(jnp.float32)                                                        # (3, 1)

    # Batch tile: whole batch when small, otherwise a 512-row (128-multiple)
    # tile so the output block stays lane-aligned and x is pipelined from HBM.
    # (512 * D * 4 B * 2 buffers stays well inside v7x's 32 MiB scoped VMEM
    # for any reasonable D.)
    tb = B if B <= block_b else block_b
    grid = (pl.cdiv(B, tb),)

    out = pl.pallas_call(
        bayesian_linear_kernel,
        out_shape=jax.ShapeDtypeStruct((1, B), jnp.float32),
        grid_spec=pltpu.PrefetchScalarGridSpec(
            num_scalar_prefetch=0,
            grid=grid,
            in_specs=[
                pl.BlockSpec((tb, D), lambda i: (i, 0)),   # x batch tile
                pl.BlockSpec((3, D), lambda i: (0, 0)),    # packed weight params (broadcast)
                pl.BlockSpec((3, 1), lambda i: (0, 0)),    # packed bias params (broadcast)
            ],
            out_specs=pl.BlockSpec((1, tb), lambda i: (0, i)),
        ),
        compiler_params=pltpu.CompilerParams(
            dimension_semantics=("parallel",),
        ),
    )(x, w_pack, b_pack)

    # Kernel output is lane-dense (1, B); present it as (B, 1) like nn.Linear.
    return out.T


if __name__ == "__main__":
    # Small shapes consistent with the module's forward: x (batch, input_dim).
    batch, input_dim, output_dim = 8, 32, 1

    key = jax.random.PRNGKey(0)
    k_x, k_wmu, k_ew, k_eb = jax.random.split(key, 4)

    x = jax.random.normal(k_x, (batch, input_dim), dtype=jnp.float32)

    # Deterministic parameter init (blitz defaults: mu ~ N(0, 0.1), rho = const neg).
    w_mu = 0.1 * jax.random.normal(k_wmu, (output_dim, input_dim), dtype=jnp.float32)
    w_rho = jnp.full((output_dim, input_dim), -3.0, dtype=jnp.float32)
    b_mu = jnp.zeros((output_dim, 1), dtype=jnp.float32)
    b_rho = jnp.full((output_dim, 1), -3.0, dtype=jnp.float32)

    # Reparameterization noise (the stochastic part of the Bayesian forward),
    # drawn deterministically from PRNGKey(0)-derived keys.
    eps_w = jax.random.normal(k_ew, (output_dim, input_dim), dtype=jnp.float32)
    eps_b = jax.random.normal(k_eb, (output_dim, 1), dtype=jnp.float32)

    y = bayesian_regressor_forward(x, w_mu, w_rho, eps_w, b_mu, b_rho, eps_b)
    y = jax.block_until_ready(y)

    # Pure-JAX reference of the same semantics (stable softplus).
    w_ref = w_mu + jnp.logaddexp(w_rho, 0.0) * eps_w
    b_ref = b_mu + jnp.logaddexp(b_rho, 0.0) * eps_b
    y_ref = x @ w_ref.T + b_ref.T

    assert y.shape == (batch, 1)
    assert jnp.allclose(y, y_ref, atol=1e-5, rtol=1e-5)

    print("KERNEL_OK")
</pallas_src>

<mosaic_0001>
module attributes {stable_mosaic.version = 11 : i64} {
  func.func @bayesian_linear_kernel(%arg0: i32, %arg1: memref<8x32xf32, #tpu.memory_space<vmem>>, %arg2: memref<3x32xf32, #tpu.memory_space<vmem>>, %arg3: memref<3x1xf32, #tpu.memory_space<vmem>>, %arg4: memref<1x8xf32, #tpu.memory_space<vmem>>) attributes {dimension_semantics = [#tpu.dimension_semantics<parallel>], iteration_bounds = array<i64: 1>, scalar_prefetch = 0 : i64, scratch_operands = 0 : i64, tpu.core_type = #tpu.core_type<tc>, window_params = [{transform_indices = @transform_0, window_bounds = array<i64: 8, 32>}, {pipeline_mode = #tpu.pipeline_mode<synchronous>, transform_indices = @transform_1, window_bounds = array<i64: 3, 32>}, {pipeline_mode = #tpu.pipeline_mode<synchronous>, transform_indices = @transform_2, window_bounds = array<i64: 3, 1>}, {transform_indices = @transform_3, window_bounds = array<i64: 1, 8>}]} {
    %c0 = arith.constant 0 : index
    %c0_0 = arith.constant 0 : index
    %0 = vector.load %arg2[%c0, %c0_0] : memref<3x32xf32, #tpu.memory_space<vmem>>, vector<1x32xf32>
    %c1 = arith.constant 1 : index
    %c0_1 = arith.constant 0 : index
    %1 = vector.load %arg2[%c1, %c0_1] : memref<3x32xf32, #tpu.memory_space<vmem>>, vector<1x32xf32>
    %cst = arith.constant 0.000000e+00 : f32
    %2 = vector.broadcast %cst : f32 to vector<1x32xf32>
    %3 = arith.maximumf %1, %2 : vector<1x32xf32>
    %4 = vector.broadcast %cst : f32 to vector<1x32xf32>
    %5 = arith.subf %1, %4 : vector<1x32xf32>
    %6 = arith.cmpf one, %5, %5 : vector<1x32xf32>
    %7 = vector.broadcast %cst : f32 to vector<1x32xf32>
    %8 = arith.addf %1, %7 : vector<1x32xf32>
    %9 = math.absf %5 : vector<1x32xf32>
    %cst_2 = arith.constant 0.000000e+00 : f32
    %10 = vector.broadcast %cst_2 : f32 to vector<1x32xf32>
    %11 = arith.subf %10, %9 : vector<1x32xf32>
    %12 = math.exp %11 : vector<1x32xf32>
    %13 = math.log1p %12 : vector<1x32xf32>
    %14 = arith.addf %3, %13 : vector<1x32xf32>
    %15 = arith.select %6, %8, %14 : vector<1x32xi1>, vector<1x32xf32>
    %c2 = arith.constant 2 : index
    %c0_3 = arith.constant 0 : index
    %16 = vector.load %arg2[%c2, %c0_3] : memref<3x32xf32, #tpu.memory_space<vmem>>, vector<1x32xf32>
    %17 = arith.mulf %15, %16 : vector<1x32xf32>
    %18 = arith.addf %0, %17 : vector<1x32xf32>
    %c0_4 = arith.constant 0 : index
    %c0_5 = arith.constant 0 : index
    %19 = vector.load %arg3[%c0_4, %c0_5] : memref<3x1xf32, #tpu.memory_space<vmem>>, vector<1x1xf32>
    %c1_6 = arith.constant 1 : index
    %c0_7 = arith.constant 0 : index
    %20 = vector.load %arg3[%c1_6, %c0_7] : memref<3x1xf32, #tpu.memory_space<vmem>>, vector<1x1xf32>
    %cst_8 = arith.constant 0.000000e+00 : f32
    %21 = vector.broadcast %cst_8 : f32 to vector<1x1xf32>
    %22 = arith.maximumf %20, %21 : vector<1x1xf32>
    %23 = vector.broadcast %cst_8 : f32 to vector<1x1xf32>
    %24 = arith.subf %20, %23 : vector<1x1xf32>
    %25 = arith.cmpf one, %24, %24 : vector<1x1xf32>
    %26 = vector.broadcast %cst_8 : f32 to vector<1x1xf32>
    %27 = arith.addf %20, %26 : vector<1x1xf32>
    %28 = math.absf %24 : vector<1x1xf32>
    %cst_9 = arith.constant 0.000000e+00 : f32
    %29 = vector.broadcast %cst_9 : f32 to vector<1x1xf32>
    %30 = arith.subf %29, %28 : vector<1x1xf32>
    %31 = math.exp %30 : vector<1x1xf32>
    %32 = math.log1p %31 : vector<1x1xf32>
    %33 = arith.addf %22, %32 : vector<1x1xf32>
    %34 = arith.select %25, %27, %33 : vector<1x1xi1>, vector<1x1xf32>
    %c2_10 = arith.constant 2 : index
    %c0_11 = arith.constant 0 : index
    %35 = vector.load %arg3[%c2_10, %c0_11] : memref<3x1xf32, #tpu.memory_space<vmem>>, vector<1x1xf32>
    %36 = arith.mulf %34, %35 : vector<1x1xf32>
    %37 = arith.addf %19, %36 : vector<1x1xf32>
    %c0_12 = arith.constant 0 : index
    %c0_13 = arith.constant 0 : index
    %38 = vector.load %arg1[%c0_12, %c0_13] : memref<8x32xf32, #tpu.memory_space<vmem>>, vector<8x32xf32>
    %cst_14 = arith.constant dense<0.000000e+00> : vector<1x8xf32>
    %39 = tpu.matmul %18, %38, %cst_14 {dimension_numbers = #tpu.dot_dimension_numbers<[1], [1], [0], [0], [0, 0, 1, 0], [], []>} : vector<1x32xf32>, vector<8x32xf32>, vector<1x8xf32> -> vector<1x8xf32>
    %40 = vector.broadcast %37 : vector<1x1xf32> to vector<1x8xf32>
    %41 = arith.addf %39, %40 : vector<1x8xf32>
    %c0_15 = arith.constant 0 : index
    %c0_16 = arith.constant 0 : index
    %42 = vector.load %arg4[%c0_15, %c0_16] : memref<1x8xf32, #tpu.memory_space<vmem>>, vector<1x8xf32>
    tpu.vector_store %arg4[%c0_15, %c0_16], %41 {strides = array<i32>} : memref<1x8xf32, #tpu.memory_space<vmem>>, vector<1x8xf32>,
    return
  }
  func.func @transform_0(%arg0: i32) -> (i32, i32) {
    %c0_i32 = arith.constant 0 : i32
    %c0_i32_0 = arith.constant 0 : i32
    return %arg0, %c0_i32 : i32, i32
  }
  func.func @transform_1(%arg0: i32) -> (i32, i32) {
    %c0_i32 = arith.constant 0 : i32
    %c0_i32_0 = arith.constant 0 : i32
    %c0_i32_1 = arith.constant 0 : i32
    return %c0_i32, %c0_i32_0 : i32, i32
  }
  func.func @transform_2(%arg0: i32) -> (i32, i32) {
    %c0_i32 = arith.constant 0 : i32
    %c0_i32_0 = arith.constant 0 : i32
    %c0_i32_1 = arith.constant 0 : i32
    return %c0_i32, %c0_i32_0 : i32, i32
  }
  func.func @transform_3(%arg0: i32) -> (i32, i32) {
    %c0_i32 = arith.constant 0 : i32
    %c0_i32_0 = arith.constant 0 : i32
    return %c0_i32, %arg0 : i32, i32
  }
}

</mosaic_0001>

<llo_original>
// kernel: tpu_custom_call.1
$region0: #{tpu_custom_call.1}
  #allocation0 [shape = 'u32[]', space=smem, size = 0x4, offset = 0x4, fixed_abs, tag = 'smem constant byte address 0x4 - core index']
  #allocation1 [shape = 'u32[72,128]{1,0:T(1,128)}', space=vmem, size = 0x9000, scoped, tag = 'internal scratch']
  %s0 = inlined_call_operand.hbm [shape: f32[8,32], index: 0, kind: input, shape index: {}]
  %s1 = inlined_call_operand.vmem [shape: f32[3,32], index: 1, kind: input, shape index: {}]
  %s2 = inlined_call_operand.vmem [shape: f32[3,1], index: 2, kind: input, shape index: {}]
  %s3 = inlined_call_operand.hbm [shape: f32[1,8], index: 3, kind: output, shape index: {}]
  %s4 = sld [smem:[#allocation0]]
  $region26: #{tpu_custom_call.1} parent=0
    _
  %s6 = ssub.s32 1, %s4
  %s7 = scalar_select 0, %s6, %s4
  $region1: #{tpu_custom_call.1} parent=0
    #allocation2 [shape = 'u8[4096]{0}', space=vmem, size = 0x1000, scoped, tag = 'input window, operand 0, single buffered']
    #allocation3 [shape = 's32[1]{0}', space=sflag, size = 0x4, scoped, tag = 'scoped memory for tpu_custom_call.1']
    #allocation4 [shape = 's32[1]{0}', space=sflag, size = 0x4, scoped, tag = 'scoped memory for tpu_custom_call.1']
    #allocation5 [shape = 'u8[512]{0}', space=vmem, size = 0x400, scoped, tag = 'output window, operand 0, single buffered']
    %8 = vsyncpa [#allocation3], 0
    %9 = vsyncpa [#allocation4], 0
    // Predicated region
    $region2: #{tpu_custom_call.1} parent=1 // pred_check
      _
    $region3: #{tpu_custom_call.1} parent=1 // pred_check_branch
      %11 = sbr.rel (0) target = $region5
    $region4: #{tpu_custom_call.1} parent=1 // pred_region
      %13 = vsyncadd [#allocation3], 0
      %s15 = sshll.u32 %s0, 4
      %s16 = int_to_ptr.hbm [resolvable:$true] %s15
      %s17 = sshll.u32 [#allocation2], 4
      %s18 = int_to_ptr.vmem [resolvable:$true] %s17
      %20 = dma.hbm_to_vmem [thread:$0]  %s16, 128, %s18, [#allocation3]
    $region5: #{tpu_custom_call.1} parent=1 // pred_fallthru
      _
    // Predicated region
    $region6: #{tpu_custom_call.1} parent=1 // pred_check
      _
    $region7: #{tpu_custom_call.1} parent=1 // pred_check_branch
      %22 = sbr.rel (0) target = $region9
    $region8: #{tpu_custom_call.1} parent=1 // pred_region
      _
    $region9: #{tpu_custom_call.1} parent=1 // pred_fallthru
      _
    // Predicated region
    $region10: #{tpu_custom_call.1} parent=1 // pred_check
      _
    $region11: #{tpu_custom_call.1} parent=1 // pred_check_branch
      %24 = sbr.rel (0) target = $region13
    $region12: #{tpu_custom_call.1} parent=1 // pred_region
      _
    $region13: #{tpu_custom_call.1} parent=1 // pred_fallthru
      _
    // Predicated region
    $region14: #{tpu_custom_call.1} parent=1 // pred_check
      _
    $region15: #{tpu_custom_call.1} parent=1 // pred_check_branch
      %26 = sbr.rel (0) target = $region17
    $region16: #{tpu_custom_call.1} parent=1 // pred_region
      %28 = dma.done [#allocation3], 128
    $region17: #{tpu_custom_call.1} parent=1 // pred_fallthru
      _
    %v29 = vld [vmem:[%s1] sm:$0x1]
    %v30 = vld [vmem:[%s1 + $0x1] sm:$0x1]
    %v31 = vmax.f32 %v30, 0.0
    %vm32 = vcmp.ne.f32.partialorder %v30, %v30
    %v33 = vadd.f32 %v30, 0.0
    %v34 = vand.u32 2147483647, %v30
    %v35 = vsub.f32 0.0, %v34
    %v36 = vmul.f32 %v35, 1.442695
    %v37 = vpow.pop %v36
    %v38 = vadd.f32 %v37, 1.0
    %v39 = vlog2.pop %v38
    %v40 = vmul.f32 %v39, 0.6931472
    %v41 = vmul.f32 -0.5, %v37
    %v42 = vadd.f32 %v41, 1.0
    %v43 = vmul.f32 %v42, %v37
    %v44 = vand.u32 2147483647, %v37
    %vm45 = vcmp.lt.f32.partialorder %v44, 0.0004427343
    %v46 = vsel %vm45, %v43, %v40
    %v47 = vadd.f32 %v31, %v46
    %v48 = vsel %vm32, %v33, %v47
    %v49 = vld [vmem:[%s1 + $0x2] sm:$0x1]
    %v50 = vmul.f32 %v48, %v49
    %v51 = vadd.f32 %v29, %v50
    %v52 = vld [vmem:[%s2] sm:$0x1]
    %v53 = vld [vmem:[%s2 + $0x1] sm:$0x1]
    %v54 = vmax.f32 %v53, 0.0
    %vm55 = vcmp.ne.f32.partialorder %v53, %v53
    %v56 = vadd.f32 %v53, 0.0
    %v57 = vand.u32 2147483647, %v53
    %v58 = vsub.f32 0.0, %v57
    %v59 = vmul.f32 %v58, 1.442695
    %v60 = vpow.pop %v59
    %v61 = vadd.f32 %v60, 1.0
    %v62 = vlog2.pop %v61
    %v63 = vmul.f32 %v62, 0.6931472
    %v64 = vmul.f32 -0.5, %v60
    %v65 = vadd.f32 %v64, 1.0
    %v66 = vmul.f32 %v65, %v60
    %v67 = vand.u32 2147483647, %v60
    %vm68 = vcmp.lt.f32.partialorder %v67, 0.0004427343
    %v69 = vsel %vm68, %v66, %v63
    %v70 = vadd.f32 %v54, %v69
    %v71 = vsel %vm55, %v56, %v70
    %v72 = vld [vmem:[%s2 + $0x2] sm:$0x1]
    %v73 = vmul.f32 %v71, %v72
    %v74 = vadd.f32 %v52, %v73
    %v75 = vld [vmem:[#allocation2] sm:$0xff]
    %77 = vset.pattern.permute.xlu0 0
    %78 = vperm.xlu0 %77, %v74
    %v79 = vpop.permute.xlu0 %78
    %vm81 = vcmask 261120
    %v83 = vsel %vm81, %v51, 0
    %v86 = vsel %vm81, %v75, 0
    %88 = vmatpush.xpose.msra.mxu0 0.0
    %89 = vmatpush.xpose.msra.mxu0 0.0
    %90 = vmatpush.xpose.msra.mxu0 0.0
    %91 = vmatpush.xpose.msra.mxu0 0.0
    %92 = vmatpush.xpose.msra.mxu0 0.0
    %93 = vmatpush.xpose.msra.mxu0 0.0
    %94 = vmatpush.xpose.msra.mxu0 0.0
    %95 = vmatpush.xpose.msra.mxu0 0.0
    %96 = vmatpush.xpose.msra.mxu0 0.0
    %97 = vmatpush.xpose.msra.mxu0 0.0
    %98 = vmatpush.xpose.msra.mxu0 0.0
    %99 = vmatpush.xpose.msra.mxu0 0.0
    %100 = vmatpush.xpose.msra.mxu0 0.0
    %101 = vmatpush.xpose.msra.mxu0 0.0
    %102 = vmatpush.xpose.msra.mxu0 0.0
    %103 = vmatpush.xpose.msra.mxu0 %v86
    %104 = vmatmul.f32.gmra.mxu0 %v83
    %v105 = vpop.f32.mrf.mxu0
    %v106 = vadd.f32 %v79, %v105
    %107 = vdwg.mxu0
    %vm108 = vcmask 57344
    %109 = vst.msk [vmem:[#allocation5] sm:$0x1] %vm108, %v106
    // Predicated region
    $region18: #{tpu_custom_call.1} parent=1 // pred_check
      _
    $region19: #{tpu_custom_call.1} parent=1 // pred_check_branch
      %111 = sbr.rel (0) target = $region21
    $region20: #{tpu_custom_call.1} parent=1 // pred_region
      %113 = vsyncadd [#allocation4], 0
      %s115 = sshll.u32 [#allocation5], 4
      %s116 = int_to_ptr.vmem [resolvable:$true] %s115
      %s117 = sshll.u32 %s3, 4
      %s118 = int_to_ptr.hbm [resolvable:$true] %s117
      %120 = dma.vmem_to_hbm [thread:$0]  %s116, 16, %s118, [#allocation4]
    $region21: #{tpu_custom_call.1} parent=1 // pred_fallthru
      _
    // Predicated region
    $region22: #{tpu_custom_call.1} parent=1 // pred_check
      _
    $region23: #{tpu_custom_call.1} parent=1 // pred_check_branch
      %122 = sbr.rel (0) target = $region25
    $region24: #{tpu_custom_call.1} parent=1 // pred_region
      %124 = dma.done [#allocation4], 16
    $region25: #{tpu_custom_call.1} parent=1 // pred_fallthru
      _
    %125 = vsyncpa [#allocation3], 1
    %126 = vsyncpa [#allocation4], 1

</llo_original>
